<compile_context>
chip_gen: v5e
topology: v5e:2x2
jax: 0.10.0
libtpu: 0.0.40
codegen_flags: <defaults>
</compile_context>

<pallas_src>
import functools

import jax
import jax.numpy as jnp
from jax.experimental import pallas as pl
from jax.experimental.pallas import tpu as pltpu

R_MARGIN = 1.0   # module rMargin
EPS = 0.1        # module self.eps
PD_EPS = 1e-6    # nn.PairwiseDistance default eps (added to the difference)

_VMEM_LIMIT_BYTES = 48 * 1024 * 1024   # safe on v5e/v6e (128 MiB) and v7x (64 MiB)


def _loss_kernel(e1_ref, e2_ref, t_ref, out_ref, *, total_rows, block_rows, mask_last):
    """One batch tile: per-row contrastive loss -> (masked) partial sum.

    e1_ref, e2_ref : (TB, D) VMEM (any float dtype; cast to f32 here)
    t_ref          : (TB, 1) VMEM f32
    out_ref        : (1, 8, 128) VMEM f32 -- tile partial sum, lane-dense
    """
    e1 = e1_ref[...].astype(jnp.float32)
    e2 = e2_ref[...].astype(jnp.float32)
    diff = e1 - e2 + PD_EPS                                        # PairwiseDistance eps
    ld = jnp.sqrt(jnp.sum(diff * diff, axis=-1, keepdims=True))    # (TB, 1)
    rd = (R_MARGIN + EPS) - ld                                     # (TB, 1)
    t = t_ref[...].astype(jnp.float32)                             # (TB, 1)
    per_row = t * ld + (1.0 - t) * jnp.maximum(0.0, rd)            # (TB, 1)

    if not mask_last:
        # B % tb == 0: every row of every tile is valid -> no mask work at all.
        out_ref[...] = jnp.full(out_ref.shape, jnp.sum(per_row), dtype=jnp.float32)
    else:
        i = pl.program_id(0)
        last = pl.num_programs(0) - 1

        @pl.when(i != last)
        def _():
            out_ref[...] = jnp.full(out_ref.shape, jnp.sum(per_row), dtype=jnp.float32)

        @pl.when(i == last)
        def _():
            # Ragged last tile: rows >= total_rows hold unspecified data.  A
            # select (jnp.where) discards them; a multiply-by-mask would
            # propagate inf/NaN, so keep the select.
            row_ids = i * block_rows + jax.lax.broadcasted_iota(
                jnp.int32, per_row.shape, 0)
            masked = jnp.where(row_ids < total_rows, per_row, 0.0)
            out_ref[...] = jnp.full(out_ref.shape, jnp.sum(masked), dtype=jnp.float32)


def _sublane_multiple(itemsize):
    # f32 -> 8, bf16 -> 16, int8/fp8 -> 32 (dtype-native second-minor tiling).
    return max(8, 32 // max(1, itemsize))


def _choose_block_rows(batch, feat, itemsize, vmem_budget_bytes=32 * 1024 * 1024):
    """Largest batch tile whose resident pipeline buffers fit the VMEM budget.

    Footprint per row:
      2 embedding inputs x 2 pipeline buffers x feat*itemsize
      + 2 target buffers x 128 lanes x 4 B   (the (tb,1) f32 block is lane-padded)
    Output buffers are a few KiB total and ignored.
    """
    sub = _sublane_multiple(itemsize)
    per_row_bytes = 4 * feat * itemsize + 2 * 128 * 4
    tb = vmem_budget_bytes // max(1, per_row_bytes)
    tb = max(sub, (tb // sub) * sub)

    b_up = ((batch + sub - 1) // sub) * sub
    tb = min(tb, b_up)

    # Keep at least 2 grid steps when the batch allows it, so the "parallel"
    # grid axis can shard across both v7x TensorCores (harmless on 1-TC chips).
    if b_up >= 2 * sub:
        half = ((((batch + 1) // 2) + sub - 1) // sub) * sub
        tb = min(tb, max(sub, half))
    return max(sub, tb)


def _reference(emb1, emb2, target):
    diff = emb1.astype(jnp.float32) - emb2.astype(jnp.float32) + PD_EPS
    ld = jnp.sqrt(jnp.sum(diff * diff, axis=-1))
    rd = (R_MARGIN + EPS) - ld
    t = target.astype(jnp.float32)
    loss = t * ld + (1.0 - t) * jnp.maximum(0.0, rd)
    return jnp.mean(loss)


def custom_distance_loss(emb1, emb2, target, *, block_rows=None, use_pallas=None):
    """emb1, emb2: (B, D) ; target: (B,) -> scalar f32 loss."""
    B, D = emb1.shape
    itemsize = jnp.dtype(emb1.dtype).itemsize
    sub = _sublane_multiple(itemsize)

    if use_pallas is None:
        # Kernel-launch + per-step overhead dominates for few-hundred-KB
        # problems; let XLA fuse the tiny case.
        use_pallas = (2 * B * D * itemsize) >= (256 * 1024)
    if not use_pallas:
        return _reference(emb1, emb2, target)

    if block_rows is None:
        tb = _choose_block_rows(B, D, itemsize)
    else:
        tb = max(sub, ((int(block_rows) + sub - 1) // sub) * sub)

    num_tiles = pl.cdiv(B, tb)
    mask_last = (B % tb) != 0   # trace-time specialization: no mask when exact

    # No jnp.pad: the last block may be ragged; the kernel masks it.
    t2d = target.reshape(B, 1).astype(jnp.float32)

    kernel = functools.partial(
        _loss_kernel, total_rows=B, block_rows=tb, mask_last=mask_last)

    bytes_accessed = 2 * B * D * itemsize + B * 4 + num_tiles * 8 * 128 * 4
    cost = pl.CostEstimate(
        flops=4 * B * D, transcendentals=B, bytes_accessed=bytes_accessed)

    partials = pl.pallas_call(
        kernel,
        out_shape=jax.ShapeDtypeStruct((num_tiles, 8, 128), jnp.float32),
        grid=(num_tiles,),
        in_specs=[
            pl.BlockSpec((tb, D), lambda i: (i, 0)),
            pl.BlockSpec((tb, D), lambda i: (i, 0)),
            pl.BlockSpec((tb, 1), lambda i: (i, 0)),
        ],
        out_specs=pl.BlockSpec((1, 8, 128), lambda i: (i, 0, 0)),
        compiler_params=pltpu.CompilerParams(
            dimension_semantics=("parallel",),
            vmem_limit_bytes=_VMEM_LIMIT_BYTES,
        ),
        cost_estimate=cost,
    )(emb1, emb2, t2d)

    # Tiny final reduction over per-tile partials; divide by the *true* B.
    return jnp.sum(partials[:, 0, 0]) / jnp.float32(B)


if __name__ == "__main__":
    key = jax.random.PRNGKey(0)
    k1, k2, k3 = jax.random.split(key, 3)

    # 1) Small shape with B not a multiple of the tile -> ragged last block,
    #    exercises the pl.when-gated mask path (auto tb=16 here -> 2 tiles).
    B, D = 20, 32
    emb1 = jax.random.normal(k1, (B, D), dtype=jnp.float32)
    emb2 = jax.random.normal(k2, (B, D), dtype=jnp.float32)
    target = jax.random.bernoulli(k3, p=0.5, shape=(B,)).astype(jnp.float32)
    loss = custom_distance_loss(emb1, emb2, target, use_pallas=True)
    jax.block_until_ready(loss)
    ref = _reference(emb1, emb2, target)
    assert jnp.allclose(loss, ref, atol=1e-5, rtol=1e-5), (loss, ref)

    # 2) Multi-tile grid (forced small tile) -> pipelined path, ragged tail.
    B2, D2 = 200, 128
    e1b = jax.random.normal(k1, (B2, D2), dtype=jnp.float32)
    e2b = jax.random.normal(k2, (B2, D2), dtype=jnp.float32)
    tgt2 = jax.random.bernoulli(k3, p=0.5, shape=(B2,)).astype(jnp.float32)
    loss2 = custom_distance_loss(e1b, e2b, tgt2, block_rows=64, use_pallas=True)
    jax.block_until_ready(loss2)
    ref2 = _reference(e1b, e2b, tgt2)
    assert jnp.allclose(loss2, ref2, atol=1e-5, rtol=1e-5), (loss2, ref2)

    # 3) bf16 inputs stay bf16 in HBM; block rounded to the 16-row sublane
    #    multiple; kernel upcasts to f32 internally.
    e1c = e1b.astype(jnp.bfloat16)
    e2c = e2b.astype(jnp.bfloat16)
    loss3 = custom_distance_loss(e1c, e2c, tgt2, block_rows=64, use_pallas=True)
    jax.block_until_ready(loss3)
    ref3 = _reference(e1c, e2c, tgt2)
    assert jnp.allclose(loss3, ref3, atol=5e-2, rtol=5e-2), (loss3, ref3)

    # 4) Exact-multiple batch -> trace-time specialization with no mask at all.
    B4, D4 = 256, 128
    e1d = jax.random.normal(k1, (B4, D4), dtype=jnp.float32)
    e2d = jax.random.normal(k2, (B4, D4), dtype=jnp.float32)
    tgt4 = jax.random.bernoulli(k3, p=0.5, shape=(B4,)).astype(jnp.float32)
    loss4 = custom_distance_loss(e1d, e2d, tgt4, block_rows=128, use_pallas=True)
    jax.block_until_ready(loss4)
    ref4 = _reference(e1d, e2d, tgt4)
    assert jnp.allclose(loss4, ref4, atol=1e-5, rtol=1e-5), (loss4, ref4)

    print("KERNEL_OK")
</pallas_src>

<mosaic_0001>
module attributes {stable_mosaic.version = 11 : i64} {
  func.func @_loss_kernel(%arg0: i32, %arg1: memref<16x32xf32, #tpu.memory_space<vmem>>, %arg2: memref<16x32xf32, #tpu.memory_space<vmem>>, %arg3: memref<16x1xf32, #tpu.memory_space<vmem>>, %arg4: memref<1x8x128xf32, #tpu.memory_space<vmem>>) attributes {dimension_semantics = [#tpu.dimension_semantics<parallel>], iteration_bounds = array<i64: 2>, scalar_prefetch = 0 : i64, scratch_operands = 0 : i64, tpu.core_type = #tpu.core_type<tc>, window_params = [{transform_indices = @transform_0, window_bounds = array<i64: 16, 32>}, {transform_indices = @transform_1, window_bounds = array<i64: 16, 32>}, {transform_indices = @transform_2, window_bounds = array<i64: 16, 1>}, {transform_indices = @transform_3, window_bounds = array<i64: 1, 8, 128>}]} {
    %c0 = arith.constant 0 : index
    %c0_0 = arith.constant 0 : index
    %0 = vector.load %arg1[%c0, %c0_0] : memref<16x32xf32, #tpu.memory_space<vmem>>, vector<16x32xf32>
    %c0_1 = arith.constant 0 : index
    %c0_2 = arith.constant 0 : index
    %1 = vector.load %arg2[%c0_1, %c0_2] : memref<16x32xf32, #tpu.memory_space<vmem>>, vector<16x32xf32>
    %2 = arith.subf %0, %1 : vector<16x32xf32>
    %cst = arith.constant 9.99999997E-7 : f32
    %3 = vector.broadcast %cst : f32 to vector<16x32xf32>
    %4 = arith.addf %2, %3 : vector<16x32xf32>
    %5 = arith.mulf %4, %4 : vector<16x32xf32>
    %cst_3 = arith.constant dense<0.000000e+00> : vector<16xf32>
    %6 = vector.multi_reduction <add>, %5, %cst_3 [1] : vector<16x32xf32> to vector<16xf32>
    %7 = vector.shape_cast %6 : vector<16xf32> to vector<16x1xf32>
    %8 = math.sqrt %7 : vector<16x1xf32>
    %cst_4 = arith.constant 1.100000e+00 : f32
    %9 = vector.broadcast %cst_4 : f32 to vector<16x1xf32>
    %10 = arith.subf %9, %8 : vector<16x1xf32>
    %c0_5 = arith.constant 0 : index
    %c0_6 = arith.constant 0 : index
    %11 = vector.load %arg3[%c0_5, %c0_6] : memref<16x1xf32, #tpu.memory_space<vmem>>, vector<16x1xf32>
    %12 = arith.mulf %11, %8 : vector<16x1xf32>
    %cst_7 = arith.constant 1.000000e+00 : f32
    %13 = vector.broadcast %cst_7 : f32 to vector<16x1xf32>
    %14 = arith.subf %13, %11 : vector<16x1xf32>
    %cst_8 = arith.constant 0.000000e+00 : f32
    %15 = vector.broadcast %cst_8 : f32 to vector<16x1xf32>
    %16 = arith.maximumf %15, %10 : vector<16x1xf32>
    %17 = arith.mulf %14, %16 : vector<16x1xf32>
    %18 = arith.addf %12, %17 : vector<16x1xf32>
    %c1_i32 = arith.constant 1 : i32
    %19 = arith.cmpi ne, %arg0, %c1_i32 : i32
    %20 = arith.extui %19 : i1 to i32
    %c0_i32 = arith.constant 0 : i32
    %21 = arith.cmpi ne, %20, %c0_i32 : i32
    scf.if %21 {
      %25 = vector.shape_cast %18 : vector<16x1xf32> to vector<1x16x1xf32>
      %cst_11 = arith.constant dense<0.000000e+00> : vector<1xf32>
      %26 = vector.multi_reduction <add>, %25, %cst_11 [1, 2] : vector<1x16x1xf32> to vector<1xf32>
      %27 = vector.shape_cast %26 : vector<1xf32> to vector<1x1x1xf32>
      %28 = vector.extract %27[0, 0, 0] : f32 from vector<1x1x1xf32>
      %29 = vector.broadcast %28 : f32 to vector<1x8x128xf32>
      %c0_12 = arith.constant 0 : index
      %c0_13 = arith.constant 0 : index
      %c0_14 = arith.constant 0 : index
      %30 = vector.load %arg4[%c0_12, %c0_13, %c0_14] : memref<1x8x128xf32, #tpu.memory_space<vmem>>, vector<1x8x128xf32>
      tpu.vector_store %arg4[%c0_12, %c0_13, %c0_14], %29 {strides = array<i32>} : memref<1x8x128xf32, #tpu.memory_space<vmem>>, vector<1x8x128xf32>,
    } else {
    }
    %c1_i32_9 = arith.constant 1 : i32
    %22 = arith.cmpi eq, %arg0, %c1_i32_9 : i32
    %23 = arith.extui %22 : i1 to i32
    %c0_i32_10 = arith.constant 0 : i32
    %24 = arith.cmpi ne, %23, %c0_i32_10 : i32
    scf.if %24 {
      %c16_i32 = arith.constant 16 : i32
      %25 = arith.muli %arg0, %c16_i32 : i32
      %26 = tpu.iota {dimensions = array<i32: 0>} : vector<16x1xi32>
      %27 = vector.broadcast %25 : i32 to vector<16x1xi32>
      %28 = arith.addi %27, %26 : vector<16x1xi32>
      %c20_i32 = arith.constant 20 : i32
      %29 = vector.broadcast %c20_i32 : i32 to vector<16x1xi32>
      %30 = arith.cmpi slt, %28, %29 : vector<16x1xi32>
      %cst_11 = arith.constant 0.000000e+00 : f32
      %31 = vector.broadcast %cst_11 : f32 to vector<16x1xf32>
      %32 = arith.select %30, %18, %31 : vector<16x1xi1>, vector<16x1xf32>
      %33 = vector.shape_cast %32 : vector<16x1xf32> to vector<1x16x1xf32>
      %cst_12 = arith.constant dense<0.000000e+00> : vector<1xf32>
      %34 = vector.multi_reduction <add>, %33, %cst_12 [1, 2] : vector<1x16x1xf32> to vector<1xf32>
      %35 = vector.shape_cast %34 : vector<1xf32> to vector<1x1x1xf32>
      %36 = vector.extract %35[0, 0, 0] : f32 from vector<1x1x1xf32>
      %37 = vector.broadcast %36 : f32 to vector<1x8x128xf32>
      %c0_13 = arith.constant 0 : index
      %c0_14 = arith.constant 0 : index
      %c0_15 = arith.constant 0 : index
      %38 = vector.load %arg4[%c0_13, %c0_14, %c0_15] : memref<1x8x128xf32, #tpu.memory_space<vmem>>, vector<1x8x128xf32>
      tpu.vector_store %arg4[%c0_13, %c0_14, %c0_15], %37 {strides = array<i32>} : memref<1x8x128xf32, #tpu.memory_space<vmem>>, vector<1x8x128xf32>,
    } else {
    }
    return
  }
  func.func @transform_0(%arg0: i32) -> (i32, i32) {
    %c0_i32 = arith.constant 0 : i32
    %c0_i32_0 = arith.constant 0 : i32
    return %arg0, %c0_i32 : i32, i32
  }
  func.func @transform_1(%arg0: i32) -> (i32, i32) {
    %c0_i32 = arith.constant 0 : i32
    %c0_i32_0 = arith.constant 0 : i32
    return %arg0, %c0_i32 : i32, i32
  }
  func.func @transform_2(%arg0: i32) -> (i32, i32) {
    %c0_i32 = arith.constant 0 : i32
    %c0_i32_0 = arith.constant 0 : i32
    return %arg0, %c0_i32 : i32, i32
  }
  func.func @transform_3(%arg0: i32) -> (i32, i32, i32) {
    %c0_i32 = arith.constant 0 : i32
    %c0_i32_0 = arith.constant 0 : i32
    %c0_i32_1 = arith.constant 0 : i32
    return %arg0, %c0_i32, %c0_i32_0 : i32, i32, i32
  }
}

</mosaic_0001>

<llo_original>
// kernel: tpu_custom_call.1
$region0: #{tpu_custom_call.1}
  #allocation0 [shape = 'u32[]', space=smem, size = 0x4, offset = 0x4, fixed_abs, tag = 'smem constant byte address 0x4 - core index']
  #allocation1 [shape = 'u32[72,128]{1,0:T(1,128)}', space=vmem, size = 0x9000, scoped, tag = 'internal scratch']
  %s0 = inlined_call_operand.vmem [shape: f32[20,32], index: 0, kind: input, shape index: {}]
  %s1 = inlined_call_operand.hbm [shape: f32[20,32], index: 1, kind: input, shape index: {}]
  %s2 = inlined_call_operand.vmem [shape: f32[20,1], index: 2, kind: input, shape index: {}]
  %s3 = inlined_call_operand.hbm [shape: f32[2,8,128], index: 3, kind: output, shape index: {}]
  %s4 = sld [smem:[#allocation0]]
  $region57: #{tpu_custom_call.1} parent=0
    _
  %s6 = ssub.s32 1, %s4
  %s7 = scalar_select 0, %s6, %s4
  $region1: #{tpu_custom_call.1} parent=0
    #allocation2 [shape = 'u8[16384]{0}', space=vmem, size = 0x4000, scoped, tag = 'input window, operand 1']
    #allocation3 [shape = 's32[2]{0}', space=sflag, size = 0x8, scoped, tag = 'scoped memory for tpu_custom_call.1']
    #allocation4 [shape = 's32[2]{0}', space=sflag, size = 0x8, scoped, tag = 'scoped memory for tpu_custom_call.1']
    #allocation5 [shape = 'u8[8192]{0}', space=vmem, size = 0x2000, scoped, tag = 'output window, operand 0']
    %8 = vsyncpa [#allocation3], 0
    %s9 = scalar_lea.sflag [#allocation3], 1
    %10 = vsyncpa %s9, 0
    %11 = vsyncpa [#allocation4], 0
    %s12 = scalar_lea.sflag [#allocation4], 1
    %13 = vsyncpa %s12, 0
    loop: start=0, step=1, limit=4
    $region2: #{tpu_custom_call.1} parent=1 // loop_pre_header
      _
    $region3: #{tpu_custom_call.1} parent=1 // loop_header
      %s15 = sphi 0, %s19
      %p16 = scmp.ge.s32.totalorder %s15, 4
      %s25 = sphi 0, %s27
      %s28 = sphi 0, %s25
      %s29 = sphi 0, %s28
      %s45 = sphi 0, %s29
      %s51 = sphi 0, %s53
      %s54 = sphi 0, %s51
      %s55 = sphi 0, %s54
      %s71 = sphi 0, %s55
      %s77 = sphi 0, %s79
      %s80 = sphi 0, %s77
      %s81 = sphi 0, %s80
      %s97 = sphi 0, %s81
      %s103 = sphi 0, %s105
      %s106 = sphi 0, %s103
      %s107 = sphi 0, %s106
      %s123 = sphi 0, %s107
    $region4: #{tpu_custom_call.1} parent=1 // loop_header_branch
      %18 = sbr.rel (%p16) target = $region8
    $region5: #{tpu_custom_call.1} parent=1 // loop_body
      %s20 = ssub.s32 %s15, 1
      %s21 = ssub.s32 %s15, 2
      %s22 = sadd.s32 %s15, 1
      %s23 = ssub.s32 %s15, %s22
      %p24 = scmp.eq.s32.totalorder %s23, 0
      %s26 = sadd.s32 %s25, 1
      %s27 = scalar_select %p24, %s25, %s26
      %p30 = pneg %p24
      %p31 = scmp.eq.s32.totalorder %s15, 1
      %p32 = por %p30, %p31
      %p33 = scmp.ne.s32.totalorder %s25, %s28
      %p34 = scmp.eq.s32.totalorder %s15, 0
      %p35 = por %p33, %p34
      %p36 = scmp.ne.s32.totalorder %s25, %s28
      %p37 = scmp.eq.s32.totalorder %s20, 1
      %p38 = por %p36, %p37
      %p39 = scmp.ne.s32.totalorder %s28, %s29
      %p40 = scmp.eq.s32.totalorder %s20, 0
      %p41 = por %p39, %p40
      %p42 = scmp.ne.s32.totalorder %s28, %s29
      %p43 = scmp.eq.s32.totalorder %s21, 1
      %p44 = por %p42, %p43
      %p46 = scmp.ne.s32.totalorder %s29, %s45
      %p47 = scmp.eq.s32.totalorder %s21, 0
      %p48 = por %p46, %p47
      %s49 = ssub.s32 %s15, %s22
      %p50 = scmp.eq.s32.totalorder %s49, 0
      %s52 = sadd.s32 %s51, 1
      %s53 = scalar_select %p50, %s51, %s52
      %p56 = pneg %p50
      %p57 = scmp.eq.s32.totalorder %s15, 1
      %p58 = por %p56, %p57
      %p59 = scmp.ne.s32.totalorder %s51, %s54
      %p60 = scmp.eq.s32.totalorder %s15, 0
      %p61 = por %p59, %p60
      %p62 = scmp.ne.s32.totalorder %s51, %s54
      %p63 = scmp.eq.s32.totalorder %s20, 1
      %p64 = por %p62, %p63
      %p65 = scmp.ne.s32.totalorder %s54, %s55
      %p66 = scmp.eq.s32.totalorder %s20, 0
      %p67 = por %p65, %p66
      %p68 = scmp.ne.s32.totalorder %s54, %s55
      %p69 = scmp.eq.s32.totalorder %s21, 1
      %p70 = por %p68, %p69
      %p72 = scmp.ne.s32.totalorder %s55, %s71
      %p73 = scmp.eq.s32.totalorder %s21, 0
      %p74 = por %p72, %p73
      %s75 = ssub.s32 %s15, %s22
      %p76 = scmp.eq.s32.totalorder %s75, 0
      %s78 = sadd.s32 %s77, 1
      %s79 = scalar_select %p76, %s77, %s78
      %p82 = pneg %p76
      %p83 = scmp.eq.s32.totalorder %s15, 1
      %p84 = por %p82, %p83
      %p85 = scmp.ne.s32.totalorder %s77, %s80
      %p86 = scmp.eq.s32.totalorder %s15, 0
      %p87 = por %p85, %p86
      %p88 = scmp.ne.s32.totalorder %s77, %s80
      %p89 = scmp.eq.s32.totalorder %s20, 1
      %p90 = por %p88, %p89
      %p91 = scmp.ne.s32.totalorder %s80, %s81
      %p92 = scmp.eq.s32.totalorder %s20, 0
      %p93 = por %p91, %p92
      %p94 = scmp.ne.s32.totalorder %s80, %s81
      %p95 = scmp.eq.s32.totalorder %s21, 1
      %p96 = por %p94, %p95
      %p98 = scmp.ne.s32.totalorder %s81, %s97
      %p99 = scmp.eq.s32.totalorder %s21, 0
      %p100 = por %p98, %p99
      %s101 = ssub.s32 %s15, %s22
      %p102 = scmp.eq.s32.totalorder %s101, 0
      %s104 = sadd.s32 %s103, 1
      %s105 = scalar_select %p102, %s103, %s104
      %p108 = pneg %p102
      %p109 = scmp.eq.s32.totalorder %s15, 1
      %p110 = por %p108, %p109
      %p111 = scmp.ne.s32.totalorder %s103, %s106
      %p112 = scmp.eq.s32.totalorder %s15, 0
      %p113 = por %p111, %p112
      %p114 = scmp.ne.s32.totalorder %s103, %s106
      %p115 = scmp.eq.s32.totalorder %s20, 1
      %p116 = por %p114, %p115
      %p117 = scmp.ne.s32.totalorder %s106, %s107
      %p118 = scmp.eq.s32.totalorder %s20, 0
      %p119 = por %p117, %p118
      %p120 = scmp.ne.s32.totalorder %s106, %s107
      %p121 = scmp.eq.s32.totalorder %s21, 1
      %p122 = por %p120, %p121
      %p124 = scmp.ne.s32.totalorder %s107, %s123
      %p125 = scmp.eq.s32.totalorder %s21, 0
      %p126 = por %p124, %p125
      %p127 = scmp.le.s32.totalorder 1, %s15
      %p128 = scmp.lt.s32.totalorder %s15, 3
      %p129 = pnand %p127, %p128
      %p130 = pneg %p129
      // Predicated region
      $region9: #{tpu_custom_call.1} parent=5 // pred_check
        _
      $region10: #{tpu_custom_call.1} parent=5 // pred_check_branch
        %132 = sbr.rel (%p129) target = $region12
      $region11: #{tpu_custom_call.1} parent=5 // pred_region
        %s133 = ssub.s32 %s15, 1
      $region12: #{tpu_custom_call.1} parent=5 // pred_fallthru
        _
      %p134 = scmp.lt.s32.totalorder %s15, 2
      // Predicated region
      $region13: #{tpu_custom_call.1} parent=5 // pred_check
        %p135 = pneg %p134
      $region14: #{tpu_custom_call.1} parent=5 // pred_check_branch
        %137 = sbr.rel (%p135) target = $region16
      $region15: #{tpu_custom_call.1} parent=5 // pred_region
        // Predicated region
        $region17: #{tpu_custom_call.1} parent=15 // pred_check
          %p138 = pneg %p35
        $region18: #{tpu_custom_call.1} parent=15 // pred_check_branch
          %140 = sbr.rel (%p138) target = $region20
        $region19: #{tpu_custom_call.1} parent=15 // pred_region
          %s141 = smul.u32 2, %s15
          %s142 = ssub.s32 3, %s141
          %p143 = scmp.lt.s32.totalorder %s142, 2
          %s144 = scalar_select %p143, %s142, 2
          %s145 = smul.u32 8, %s144
          %p146 = scmp.lt.s32.totalorder %s141, 2
          %s147 = scalar_select %p146, %s141, 2
          %s148 = smul.addr %s147, 8
          %s149 = scalar_lea.vmem %s0, %s148
          %s150 = smul.u32 2, %s15
          %s151 = ssub.s32 3, %s150
          %p152 = scmp.lt.s32.totalorder %s151, 2
          %s153 = scalar_select %p152, %s151, 2
          %s154 = smul.u32 8, %s153
        $region20: #{tpu_custom_call.1} parent=15 // pred_fallthru
          _
        // Predicated region
        $region21: #{tpu_custom_call.1} parent=15 // pred_check
          %p155 = pneg %p61
        $region22: #{tpu_custom_call.1} parent=15 // pred_check_branch
          %157 = sbr.rel (%p155) target = $region24
        $region23: #{tpu_custom_call.1} parent=15 // pred_region
          %s158 = sand.u32 %s51, 1
          %s159 = scalar_lea.sflag [#allocation3], %s158
          %s160 = sand.u32 %s51, 1
          %s161 = smul.addr %s160, 16
          %s162 = scalar_lea.vmem [#allocation2], %s161
          %s163 = smul.u32 2, %s15
          %s164 = ssub.s32 3, %s163
          %p165 = scmp.lt.s32.totalorder %s164, 2
          %s166 = scalar_select %p165, %s164, 2
          %s167 = smul.u32 8, %s166
          %s168 = ssub.s32 16, %s167
          %s169 = sshll.u32 %s168, 4
          %170 = vsyncadd %s159, %s169
          %p171 = scmp.ne.s32.totalorder 0, %s167
          %s172 = smul.addr %s163, 8
          %s173 = scalar_lea.hbm %s1, %s172
          %s174 = smul.u32 8, %s166
          %s175 = sshll.u32 %s173, 4
          %s176 = int_to_ptr.hbm [resolvable:$true] %s175
          %s177 = sshll.u32 %s162, 4
          %s178 = int_to_ptr.vmem [resolvable:$true] %s177
          %s179 = sshll.u32 %s174, 4
          %183 = dma.hbm_to_vmem [thread:$0]  (%p171), %s176, %s179, %s178, %s159, 128, 128, 8
        $region24: #{tpu_custom_call.1} parent=15 // pred_fallthru
          _
        // Predicated region
        $region25: #{tpu_custom_call.1} parent=15 // pred_check
          %p184 = pneg %p87
        $region26: #{tpu_custom_call.1} parent=15 // pred_check_branch
          %186 = sbr.rel (%p184) target = $region28
        $region27: #{tpu_custom_call.1} parent=15 // pred_region
          %s187 = smul.u32 2, %s15
          %s188 = ssub.s32 3, %s187
          %p189 = scmp.lt.s32.totalorder %s188, 2
          %s190 = scalar_select %p189, %s188, 2
          %s191 = smul.u32 8, %s190
          %p192 = scmp.lt.s32.totalorder %s187, 2
          %s193 = scalar_select %p192, %s187, 2
          %s194 = smul.addr %s193, 8
          %s195 = scalar_lea.vmem %s2, %s194
          %s196 = smul.u32 2, %s15
          %s197 = ssub.s32 3, %s196
          %p198 = scmp.lt.s32.totalorder %s197, 2
          %s199 = scalar_select %p198, %s197, 2
          %s200 = smul.u32 8, %s199
        $region28: #{tpu_custom_call.1} parent=15 // pred_fallthru
          _
      $region16: #{tpu_custom_call.1} parent=5 // pred_fallthru
        _
      %p201 = scmp.le.s32.totalorder 1, %s15
      %p202 = scmp.lt.s32.totalorder %s15, 3
      %p203 = pnand %p201, %p202
      %p204 = pneg %p203
      // Predicated region
      $region29: #{tpu_custom_call.1} parent=5 // pred_check
        _
      $region30: #{tpu_custom_call.1} parent=5 // pred_check_branch
        %206 = sbr.rel (%p203) target = $region32
      $region31: #{tpu_custom_call.1} parent=5 // pred_region
        %s207 = ssub.s32 %s15, 1
        %s208 = sand.u32 %s54, 1
        %s209 = scalar_lea.sflag [#allocation3], %s208
        %s210 = sand.u32 %s54, 1
        %s211 = smul.addr %s210, 16
        %s212 = scalar_lea.vmem [#allocation2], %s211
        // Predicated region
        $region33: #{tpu_custom_call.1} parent=31 // pred_check
          %p213 = pneg %p67
        $region34: #{tpu_custom_call.1} parent=31 // pred_check_branch
          %215 = sbr.rel (%p213) target = $region36
        $region35: #{tpu_custom_call.1} parent=31 // pred_region
          %217 = dma.done %s209, 256
        $region36: #{tpu_custom_call.1} parent=31 // pred_fallthru
          _
        %s218 = smul.u32 2, %s20
        %s219 = ssub.s32 3, %s218
        %p220 = scmp.lt.s32.totalorder %s219, 2
        %s221 = scalar_select %p220, %s219, 2
        %s222 = smul.u32 8, %s221
        %p223 = scmp.lt.s32.totalorder %s218, 2
        %s224 = scalar_select %p223, %s218, 2
        %s225 = smul.addr %s224, 8
        %s226 = scalar_lea.vmem %s0, %s225
        %p227 = pneg %p41
        %p228 = pneg %p38
        %s229 = sand.u32 %s54, 1
        %s230 = scalar_lea.sflag [#allocation3], %s229
        %s231 = sand.u32 %s54, 1
        %s232 = smul.addr %s231, 16
        %s233 = scalar_lea.vmem [#allocation2], %s232
        %p234 = pneg %p67
        %p235 = pneg %p64
        %s236 = smul.u32 2, %s20
        %s237 = ssub.s32 3, %s236
        %p238 = scmp.lt.s32.totalorder %s237, 2
        %s239 = scalar_select %p238, %s237, 2
        %s240 = smul.u32 8, %s239
        %p241 = scmp.lt.s32.totalorder %s236, 2
        %s242 = scalar_select %p241, %s236, 2
        %s243 = smul.addr %s242, 8
        %s244 = scalar_lea.vmem %s2, %s243
        %p245 = pneg %p93
        %p246 = pneg %p90
        %p247 = pneg %p119
        %p248 = pneg %p116
        %s249 = sand.u32 %s106, 1
        %s250 = scalar_lea.sflag [#allocation4], %s249
        %s251 = sand.u32 %s106, 1
        %s252 = smul.addr %s251, 8
        %s253 = scalar_lea.vmem [#allocation5], %s252
        %s254 = smul.u32 2, %s20
        %s255 = ssub.s32 3, %s254
        %p256 = scmp.lt.s32.totalorder %s255, 2
        %s257 = scalar_select %p256, %s255, 2
        %s258 = smul.u32 8, %s257
        %p259 = scmp.lt.s32.totalorder %s254, 2
        %s260 = scalar_select %p259, %s254, 2
        %s261 = smul.addr %s260, 8
        %s262 = scalar_lea.vmem %s0, %s261
        %s263 = smul.u32 2, %s20
        %s264 = ssub.s32 3, %s263
        %p265 = scmp.lt.s32.totalorder %s264, 2
        %s266 = scalar_select %p265, %s264, 2
        %s267 = smul.u32 8, %s266
        %s268 = smul.u32 2, %s20
        %s269 = ssub.s32 3, %s268
        %p270 = scmp.lt.s32.totalorder %s269, 2
        %s271 = scalar_select %p270, %s269, 2
        %s272 = smul.u32 8, %s271
        %s273 = smul.u32 2, %s20
        %s274 = ssub.s32 3, %s273
        %p275 = scmp.lt.s32.totalorder %s274, 2
        %s276 = scalar_select %p275, %s274, 2
        %s277 = smul.u32 8, %s276
        %p278 = scmp.lt.s32.totalorder %s273, 2
        %s279 = scalar_select %p278, %s273, 2
        %s280 = smul.addr %s279, 8
        %s281 = scalar_lea.vmem %s2, %s280
        %s282 = smul.u32 2, %s20
        %s283 = ssub.s32 3, %s282
        %p284 = scmp.lt.s32.totalorder %s283, 2
        %s285 = scalar_select %p284, %s283, 2
        %s286 = smul.u32 8, %s285
        %v287 = vld [vmem:[%s262] sm:$0xff]
        %v288 = vld [vmem:[%s262 + $0x8] sm:$0xff]
        %v289 = vld [vmem:[%s212] sm:$0xff]
        %v290 = vld [vmem:[%s212 + $0x8] sm:$0xff]
        %v291 = vsub.f32 %v287, %v289
        %v292 = vsub.f32 %v288, %v290
        %v293 = vadd.f32 %v291, 1e-06
        %v294 = vadd.f32 %v292, 1e-06
        %v295 = vmul.f32 %v293, %v293
        %v296 = vmul.f32 %v294, %v294
        %vm297 = vcmask 261120
        %v298 = vsel %vm297, %v295, 0.0
        %299 = vadd.xlane.f32.xlu0 %v298
        %v300 = vpop.xlane.xlu0 %299
        %v301 = vsel %vm297, %v296, 0.0
        %302 = vadd.xlane.f32.xlu0 %v301
        %v303 = vpop.xlane.xlu0 %302
        %v304 = vrsqrt.pop %v300
        %v305 = vmul.f32 %v304, %v300
        %v306 = vmul.f32 %v305, %v304
        %v307 = vmul.f32 0.5, %v306
        %v308 = vsub.f32 1.5, %v307
        %v309 = vmul.f32 %v304, %v308
        %v310 = vmul.f32 %v300, %v309
        %vm311 = vcmp.eq.f32.partialorder %v300, inf
        %v312 = vsel %vm311, %v300, %v310
        %vm313 = vcmp.eq.f32.partialorder %v300, 0.0
        %v314 = vand.u32 %v300, 2147483648
        %v315 = vsel %vm313, %v314, %v312
        %v316 = vrsqrt.pop %v303
        %v317 = vmul.f32 %v316, %v303
        %v318 = vmul.f32 %v317, %v316
        %v319 = vmul.f32 0.5, %v318
        %v320 = vsub.f32 1.5, %v319
        %v321 = vmul.f32 %v316, %v320
        %v322 = vmul.f32 %v303, %v321
        %vm323 = vcmp.eq.f32.partialorder %v303, inf
        %v324 = vsel %vm323, %v303, %v322
        %vm325 = vcmp.eq.f32.partialorder %v303, 0.0
        %v326 = vand.u32 %v303, 2147483648
        %v327 = vsel %vm325, %v326, %v324
        %v328 = vsub.f32 1.1, %v315
        %v329 = vsub.f32 1.1, %v327
        %v330 = vld [vmem:[%s281] sm:$0xff]
        %v331 = vld [vmem:[%s281 + $0x8] sm:$0xff]
        %v332 = vmul.f32 %v330, %v315
        %v333 = vmul.f32 %v331, %v327
        %v334 = vsub.f32 1.0, %v330
        %v335 = vsub.f32 1.0, %v331
        %v336 = vmax.f32 %v328, 0.0
        %v337 = vmax.f32 %v329, 0.0
        %v338 = vmul.f32 %v334, %v336
        %v339 = vmul.f32 %v335, %v337
        %v340 = vadd.f32 %v332, %v338
        %v341 = vadd.f32 %v333, %v339
        %p342 = scmp.ne.s32.totalorder %s20, 1
        // Predicated region
        $region37: #{tpu_custom_call.1} parent=31 // pred_check
          %p343 = pneg %p342
        $region38: #{tpu_custom_call.1} parent=31 // pred_check_branch
          %345 = sbr.rel (%p343) target = $region40
        $region39: #{tpu_custom_call.1} parent=31 // pred_region
          %vm346 = vcmask 7168
          %v347 = vsel %vm346, %v340, 0.0
          %v348 = vsel %vm346, %v341, 0.0
          %v349 = vadd.f32 %v347, %v348
          %350 = vadd.xlane.f32.xlu0 %v349
          %v351 = vpop.xlane.xlu0 %350
          %v352 = vrot.slane %v351, 4
          %v353 = vadd.f32 %v351, %v352
          %v354 = vrot.slane %v353, 2
          %v355 = vadd.f32 %v353, %v354
          %v356 = vrot.slane %v355, 1
          %v357 = vadd.f32 %v355, %v356
          %s358 = vtos %v357
          %v359 = vstv %s358
          %360 = vst [vmem:[%s253] sm:$0xff] %v359
        $region40: #{tpu_custom_call.1} parent=31 // pred_fallthru
          _
        %p361 = scmp.eq.s32.totalorder %s20, 1
        // Predicated region
        $region41: #{tpu_custom_call.1} parent=31 // pred_check
          %p362 = pneg %p361
        $region42: #{tpu_custom_call.1} parent=31 // pred_check_branch
          %364 = sbr.rel (%p362) target = $region44
        $region43: #{tpu_custom_call.1} parent=31 // pred_region
          %s365 = smul.u32 %s20, 16
          %v366 = vlaneseq
          %v367 = vshrl.u32 %v366, 7
          %v368 = vadd.s32 %v367, 8
          %v369 = vstv %s365
          %v370 = vadd.s32 %v369, %v367
          %v371 = vadd.s32 %v369, %v368
          %vm372 = vcmp.lt.s32.totalorder %v370, 20
          %vm373 = vcmp.lt.s32.totalorder %v371, 20
          %v374 = vsel %vm372, %v340, 0.0
          %v375 = vsel %vm373, %v341, 0.0
          %vm376 = vcmask 7168
          %v377 = vsel %vm376, %v374, 0.0
          %v378 = vsel %vm376, %v375, 0.0
          %v379 = vadd.f32 %v377, %v378
          %380 = vadd.xlane.f32.xlu0 %v379
          %v381 = vpop.xlane.xlu0 %380
          %v382 = vrot.slane %v381, 4
          %v383 = vadd.f32 %v381, %v382
          %v384 = vrot.slane %v383, 2
          %v385 = vadd.f32 %v383, %v384
          %v386 = vrot.slane %v385, 1
          %v387 = vadd.f32 %v385, %v386
          %s388 = vtos %v387
          %v389 = vstv %s388
          %390 = vst [vmem:[%s253] sm:$0xff] %v389
        $region44: #{tpu_custom_call.1} parent=31 // pred_fallthru
          _
        %s391 = sand.u32 %s106, 1
        %s392 = scalar_lea.sflag [#allocation4], %s391
        %s393 = sand.u32 %s106, 1
        %s394 = smul.addr %s393, 8
        %s395 = scalar_lea.vmem [#allocation5], %s394
        // Predicated region
        $region45: #{tpu_custom_call.1} parent=31 // pred_check
          %p396 = pneg %p116
        $region46: #{tpu_custom_call.1} parent=31 // pred_check_branch
          %398 = sbr.rel (%p396) target = $region48
        $region47: #{tpu_custom_call.1} parent=31 // pred_region
          %400 = vsyncadd %s392, 0
          %s401 = smul.addr %s20, 8
          %s402 = scalar_lea.hbm %s3, %s401
          %s404 = sshll.u32 %s395, 4
          %s405 = int_to_ptr.vmem [resolvable:$true] %s404
          %s406 = sshll.u32 %s402, 4
          %s407 = int_to_ptr.hbm [resolvable:$true] %s406
          %409 = dma.vmem_to_hbm [thread:$0]  %s405, 128, %s407, %s392
        $region48: #{tpu_custom_call.1} parent=31 // pred_fallthru
          _
      $region32: #{tpu_custom_call.1} parent=5 // pred_fallthru
        _
      %p410 = scmp.le.s32.totalorder 2, %s15
      // Predicated region
      $region49: #{tpu_custom_call.1} parent=5 // pred_check
        %p411 = pneg %p410
      $region50: #{tpu_custom_call.1} parent=5 // pred_check_branch
        %413 = sbr.rel (%p411) target = $region52
      $region51: #{tpu_custom_call.1} parent=5 // pred_region
        %s414 = ssub.s32 %s15, 2
        // Predicated region
        $region53: #{tpu_custom_call.1} parent=51 // pred_check
          %p415 = pneg %p122
        $region54: #{tpu_custom_call.1} parent=51 // pred_check_branch
          %417 = sbr.rel (%p415) target = $region56
        $region55: #{tpu_custom_call.1} parent=51 // pred_region
          %s418 = sand.u32 %s107, 1
          %s419 = scalar_lea.sflag [#allocation4], %s418
          %s420 = sand.u32 %s107, 1
          %s421 = smul.addr %s420, 8
          %s422 = scalar_lea.vmem [#allocation5], %s421
          %424 = dma.done %s419, 128
        $region56: #{tpu_custom_call.1} parent=51 // pred_fallthru
          _
      $region52: #{tpu_custom_call.1} parent=5 // pred_fallthru
        _
    $region6: #{tpu_custom_call.1} parent=1 // loop_footer
      %s19 = sadd.s32 1, %s15
    $region7: #{tpu_custom_call.1} parent=1 // loop_footer_branch
      %14 = sbr.rel target = $region3
    $region8: #{tpu_custom_call.1} parent=1 // loop_exit
      _
    %425 = vsyncpa [#allocation3], 1
    %s426 = scalar_lea.sflag [#allocation3], 1
    %427 = vsyncpa %s426, 1
    %428 = vsyncpa [#allocation4], 1
    %s429 = scalar_lea.sflag [#allocation4], 1
    %430 = vsyncpa %s429, 1

</llo_original>
